<compile_context>
chip_gen: v5e
topology: v5e:2x2
jax: 0.10.0
libtpu: 0.0.40
codegen_flags: <defaults>
</compile_context>

<pallas_src>
import functools

import jax
import jax.numpy as jnp
from jax.experimental import pallas as pl
from jax.experimental.pallas import tpu as pltpu


def _alpha_add_kernel(fea_len, x_ref, alpha_ref, out_ref):
    # x_ref: (tb, 2*fea_len) VMEM; alpha_ref: (tb, 1) f32 VMEM; out_ref: (tb, fea_len).
    a = alpha_ref[...]                                # (tb, 1), broadcasts on lanes
    fea = x_ref[:, :fea_len].astype(jnp.float32)      # lane-aligned view when
    lab = x_ref[:, fea_len:].astype(jnp.float32)      # fea_len % 128 == 0
    # fea*a + lab*(1-a) == lab + a*(fea - lab); mix in f32, cast once at the end.
    out_ref[...] = (lab + a * (fea - lab)).astype(out_ref.dtype)


def _pick_block_rows(bs, n_hidden, fea_len, dtype, block_rows):
    """Batch-tile size: VMEM-budgeted, sublane-pack aligned, >=2 grid steps if possible."""
    dsize = jnp.dtype(dtype).itemsize
    pack = max(8, 32 // dsize)            # 8 rows f32, 16 bf16, 32 int8/fp8 per sublane
    # Double-buffered VMEM per row: input block + output block + alpha lane-padded
    # to 128 f32 lanes (the (tb,1) block is physically (tb,128) in VMEM).
    per_row = 2 * (n_hidden * dsize + fea_len * dsize + 128 * 4)
    vmem_budget = 14 * 1024 * 1024        # under v5e's 16 MiB scoped default; v6e/v7x have 32 MiB
    tb = min(block_rows, max(pack, vmem_budget // per_row))
    if tb >= bs:
        if bs >= 2 * pack:
            # Guarantee >=2 grid steps so v7x's two TensorCores both get work.
            tb = -(-((bs + 1) // 2) // pack) * pack
        else:
            tb = bs
    if tb < bs:
        tb = max(pack, (tb // pack) * pack)
    return min(tb, bs)


def alpha_add(x, alpha, fea_len, label_len, *, block_rows=2048):
    """out = fea_x * alpha + label_x * (1 - alpha), split along the hidden axis."""
    assert fea_len == label_len
    bs, n_hidden = x.shape
    assert n_hidden == fea_len + label_len
    assert alpha.shape == (bs, 1)
    alpha32 = alpha.astype(jnp.float32)   # torch.rand is f32; keep mix precision

    tb = _pick_block_rows(bs, n_hidden, fea_len, x.dtype, block_rows)
    grid = (pl.cdiv(bs, tb),)

    return pl.pallas_call(
        functools.partial(_alpha_add_kernel, fea_len),
        out_shape=jax.ShapeDtypeStruct((bs, fea_len), x.dtype),
        grid=grid,
        in_specs=[
            # Single contiguous HBM->VMEM stream per step (whole hidden row).
            pl.BlockSpec((tb, n_hidden), lambda i: (i, 0)),
            pl.BlockSpec((tb, 1), lambda i: (i, 0)),
        ],
        out_specs=pl.BlockSpec((tb, fea_len), lambda i: (i, 0)),
        compiler_params=pltpu.CompilerParams(dimension_semantics=("parallel",)),
    )(x, alpha32)


def alpha_add_forward(x, key, fea_len, label_len, **kw):
    """Matches AlphaAdd.forward: samples alpha ~ U[0,1) per row (f32), then mixes."""
    bs = x.shape[0]
    alpha = jax.random.uniform(key, (bs, 1), dtype=jnp.float32)
    return alpha_add(x, alpha, fea_len, label_len, **kw), alpha


def _ref(x, alpha, fea_len):
    xf = x.astype(jnp.float32)
    fea_x = xf[:, :fea_len]
    label_x = xf[:, fea_len:]
    return (fea_x * alpha + label_x * (1.0 - alpha)).astype(x.dtype)


if __name__ == "__main__":
    key = jax.random.PRNGKey(0)

    # --- main (lane-aligned) path: fea_len = label_len = 128 -------------------
    fea_len = label_len = 128
    bs = 64
    k1, k2, key = jax.random.split(key, 3)
    x = jax.random.normal(k1, (bs, fea_len + label_len), dtype=jnp.float32)
    out, alpha = alpha_add_forward(x, k2, fea_len, label_len)
    out = jax.block_until_ready(out)
    assert out.shape == (bs, fea_len)
    assert jnp.allclose(out, _ref(x, alpha, fea_len), atol=1e-5, rtol=1e-5)

    # --- non-lane-aligned path (in-kernel lane split): fea_len = 32 ------------
    fea_len = label_len = 32
    bs = 32
    k1, k2, key = jax.random.split(key, 3)
    x = jax.random.normal(k1, (bs, fea_len + label_len), dtype=jnp.float32)
    out, alpha = alpha_add_forward(x, k2, fea_len, label_len)
    out = jax.block_until_ready(out)
    assert out.shape == (bs, fea_len)
    assert jnp.allclose(out, _ref(x, alpha, fea_len), atol=1e-5, rtol=1e-5)

    print("KERNEL_OK")
</pallas_src>

<mosaic_0001>
module attributes {stable_mosaic.version = 11 : i64} {
  func.func @_alpha_add_kernel(%arg0: i32, %arg1: memref<32x256xf32, #tpu.memory_space<vmem>>, %arg2: memref<32x1xf32, #tpu.memory_space<vmem>>, %arg3: memref<32x128xf32, #tpu.memory_space<vmem>>) attributes {dimension_semantics = [#tpu.dimension_semantics<parallel>], iteration_bounds = array<i64: 2>, scalar_prefetch = 0 : i64, scratch_operands = 0 : i64, tpu.core_type = #tpu.core_type<tc>, window_params = [{transform_indices = @transform_0, window_bounds = array<i64: 32, 256>}, {transform_indices = @transform_1, window_bounds = array<i64: 32, 1>}, {transform_indices = @transform_2, window_bounds = array<i64: 32, 128>}]} {
    %c0 = arith.constant 0 : index
    %c0_0 = arith.constant 0 : index
    %0 = vector.load %arg2[%c0, %c0_0] : memref<32x1xf32, #tpu.memory_space<vmem>>, vector<32x1xf32>
    %c0_1 = arith.constant 0 : index
    %c0_2 = arith.constant 0 : index
    %1 = vector.load %arg1[%c0_1, %c0_2] : memref<32x256xf32, #tpu.memory_space<vmem>>, vector<32x128xf32>
    %c0_3 = arith.constant 0 : index
    %c128 = arith.constant 128 : index
    %2 = vector.load %arg1[%c0_3, %c128] : memref<32x256xf32, #tpu.memory_space<vmem>>, vector<32x128xf32>
    %3 = arith.subf %1, %2 : vector<32x128xf32>
    %4 = vector.broadcast %0 : vector<32x1xf32> to vector<32x128xf32>
    %5 = arith.mulf %4, %3 : vector<32x128xf32>
    %6 = arith.addf %2, %5 : vector<32x128xf32>
    %c0_4 = arith.constant 0 : index
    %c0_5 = arith.constant 0 : index
    %7 = vector.load %arg3[%c0_4, %c0_5] : memref<32x128xf32, #tpu.memory_space<vmem>>, vector<32x128xf32>
    tpu.vector_store %arg3[%c0_4, %c0_5], %6 {strides = array<i32>} : memref<32x128xf32, #tpu.memory_space<vmem>>, vector<32x128xf32>,
    return
  }
  func.func @transform_0(%arg0: i32) -> (i32, i32) {
    %c0_i32 = arith.constant 0 : i32
    %c0_i32_0 = arith.constant 0 : i32
    return %arg0, %c0_i32 : i32, i32
  }
  func.func @transform_1(%arg0: i32) -> (i32, i32) {
    %c0_i32 = arith.constant 0 : i32
    %c0_i32_0 = arith.constant 0 : i32
    return %arg0, %c0_i32 : i32, i32
  }
  func.func @transform_2(%arg0: i32) -> (i32, i32) {
    %c0_i32 = arith.constant 0 : i32
    %c0_i32_0 = arith.constant 0 : i32
    return %arg0, %c0_i32 : i32, i32
  }
}

</mosaic_0001>

<llo_original>
// kernel: tpu_custom_call.1
$region0: #{tpu_custom_call.1}
  #allocation0 [shape = 'u32[]', space=smem, size = 0x4, offset = 0x4, fixed_abs, tag = 'smem constant byte address 0x4 - core index']
  #allocation1 [shape = 'u32[72,128]{1,0:T(1,128)}', space=vmem, size = 0x9000, scoped, tag = 'internal scratch']
  %s0 = inlined_call_operand.hbm [shape: f32[64,256], index: 0, kind: input, shape index: {}]
  %s1 = inlined_call_operand.vmem [shape: f32[64,1], index: 1, kind: input, shape index: {}]
  %s2 = inlined_call_operand.hbm [shape: f32[64,128], index: 2, kind: output, shape index: {}]
  %s3 = sld [smem:[#allocation0]]
  $region45: #{tpu_custom_call.1} parent=0
    _
  %s5 = ssub.s32 1, %s3
  %s6 = scalar_select 0, %s5, %s3
  $region1: #{tpu_custom_call.1} parent=0
    #allocation2 [shape = 'u8[65536]{0}', space=vmem, size = 0x10000, scoped, tag = 'input window, operand 0']
    #allocation3 [shape = 's32[2]{0}', space=sflag, size = 0x8, scoped, tag = 'scoped memory for tpu_custom_call.1']
    #allocation4 [shape = 's32[2]{0}', space=sflag, size = 0x8, scoped, tag = 'scoped memory for tpu_custom_call.1']
    #allocation5 [shape = 'u8[32768]{0}', space=vmem, size = 0x8000, scoped, tag = 'output window, operand 0']
    %7 = vsyncpa [#allocation3], 0
    %s8 = scalar_lea.sflag [#allocation3], 1
    %9 = vsyncpa %s8, 0
    %10 = vsyncpa [#allocation4], 0
    %s11 = scalar_lea.sflag [#allocation4], 1
    %12 = vsyncpa %s11, 0
    loop: start=0, step=1, limit=4
    $region2: #{tpu_custom_call.1} parent=1 // loop_pre_header
      _
    $region3: #{tpu_custom_call.1} parent=1 // loop_header
      %s14 = sphi 0, %s18
      %p15 = scmp.ge.s32.totalorder %s14, 4
      %s24 = sphi 0, %s26
      %s27 = sphi 0, %s24
      %s28 = sphi 0, %s27
      %s44 = sphi 0, %s28
      %s50 = sphi 0, %s52
      %s53 = sphi 0, %s50
      %s54 = sphi 0, %s53
      %s70 = sphi 0, %s54
      %s76 = sphi 0, %s78
      %s79 = sphi 0, %s76
      %s80 = sphi 0, %s79
      %s96 = sphi 0, %s80
    $region4: #{tpu_custom_call.1} parent=1 // loop_header_branch
      %17 = sbr.rel (%p15) target = $region8
    $region5: #{tpu_custom_call.1} parent=1 // loop_body
      %s19 = ssub.s32 %s14, 1
      %s20 = ssub.s32 %s14, 2
      %s21 = sadd.s32 %s14, 1
      %s22 = ssub.s32 %s14, %s21
      %p23 = scmp.eq.s32.totalorder %s22, 0
      %s25 = sadd.s32 %s24, 1
      %s26 = scalar_select %p23, %s24, %s25
      %p29 = pneg %p23
      %p30 = scmp.eq.s32.totalorder %s14, 1
      %p31 = por %p29, %p30
      %p32 = scmp.ne.s32.totalorder %s24, %s27
      %p33 = scmp.eq.s32.totalorder %s14, 0
      %p34 = por %p32, %p33
      %p35 = scmp.ne.s32.totalorder %s24, %s27
      %p36 = scmp.eq.s32.totalorder %s19, 1
      %p37 = por %p35, %p36
      %p38 = scmp.ne.s32.totalorder %s27, %s28
      %p39 = scmp.eq.s32.totalorder %s19, 0
      %p40 = por %p38, %p39
      %p41 = scmp.ne.s32.totalorder %s27, %s28
      %p42 = scmp.eq.s32.totalorder %s20, 1
      %p43 = por %p41, %p42
      %p45 = scmp.ne.s32.totalorder %s28, %s44
      %p46 = scmp.eq.s32.totalorder %s20, 0
      %p47 = por %p45, %p46
      %s48 = ssub.s32 %s14, %s21
      %p49 = scmp.eq.s32.totalorder %s48, 0
      %s51 = sadd.s32 %s50, 1
      %s52 = scalar_select %p49, %s50, %s51
      %p55 = pneg %p49
      %p56 = scmp.eq.s32.totalorder %s14, 1
      %p57 = por %p55, %p56
      %p58 = scmp.ne.s32.totalorder %s50, %s53
      %p59 = scmp.eq.s32.totalorder %s14, 0
      %p60 = por %p58, %p59
      %p61 = scmp.ne.s32.totalorder %s50, %s53
      %p62 = scmp.eq.s32.totalorder %s19, 1
      %p63 = por %p61, %p62
      %p64 = scmp.ne.s32.totalorder %s53, %s54
      %p65 = scmp.eq.s32.totalorder %s19, 0
      %p66 = por %p64, %p65
      %p67 = scmp.ne.s32.totalorder %s53, %s54
      %p68 = scmp.eq.s32.totalorder %s20, 1
      %p69 = por %p67, %p68
      %p71 = scmp.ne.s32.totalorder %s54, %s70
      %p72 = scmp.eq.s32.totalorder %s20, 0
      %p73 = por %p71, %p72
      %s74 = ssub.s32 %s14, %s21
      %p75 = scmp.eq.s32.totalorder %s74, 0
      %s77 = sadd.s32 %s76, 1
      %s78 = scalar_select %p75, %s76, %s77
      %p81 = pneg %p75
      %p82 = scmp.eq.s32.totalorder %s14, 1
      %p83 = por %p81, %p82
      %p84 = scmp.ne.s32.totalorder %s76, %s79
      %p85 = scmp.eq.s32.totalorder %s14, 0
      %p86 = por %p84, %p85
      %p87 = scmp.ne.s32.totalorder %s76, %s79
      %p88 = scmp.eq.s32.totalorder %s19, 1
      %p89 = por %p87, %p88
      %p90 = scmp.ne.s32.totalorder %s79, %s80
      %p91 = scmp.eq.s32.totalorder %s19, 0
      %p92 = por %p90, %p91
      %p93 = scmp.ne.s32.totalorder %s79, %s80
      %p94 = scmp.eq.s32.totalorder %s20, 1
      %p95 = por %p93, %p94
      %p97 = scmp.ne.s32.totalorder %s80, %s96
      %p98 = scmp.eq.s32.totalorder %s20, 0
      %p99 = por %p97, %p98
      %p100 = scmp.le.s32.totalorder 1, %s14
      %p101 = scmp.lt.s32.totalorder %s14, 3
      %p102 = pnand %p100, %p101
      %p103 = pneg %p102
      // Predicated region
      $region9: #{tpu_custom_call.1} parent=5 // pred_check
        _
      $region10: #{tpu_custom_call.1} parent=5 // pred_check_branch
        %105 = sbr.rel (%p102) target = $region12
      $region11: #{tpu_custom_call.1} parent=5 // pred_region
        %s106 = ssub.s32 %s14, 1
      $region12: #{tpu_custom_call.1} parent=5 // pred_fallthru
        _
      %p107 = scmp.lt.s32.totalorder %s14, 2
      // Predicated region
      $region13: #{tpu_custom_call.1} parent=5 // pred_check
        %p108 = pneg %p107
      $region14: #{tpu_custom_call.1} parent=5 // pred_check_branch
        %110 = sbr.rel (%p108) target = $region16
      $region15: #{tpu_custom_call.1} parent=5 // pred_region
        // Predicated region
        $region17: #{tpu_custom_call.1} parent=15 // pred_check
          %p111 = pneg %p34
        $region18: #{tpu_custom_call.1} parent=15 // pred_check_branch
          %113 = sbr.rel (%p111) target = $region20
        $region19: #{tpu_custom_call.1} parent=15 // pred_region
          %s114 = sand.u32 %s24, 1
          %s115 = scalar_lea.sflag [#allocation3], %s114
          %s116 = sand.u32 %s24, 1
          %s117 = smul.addr %s116, 64
          %s118 = scalar_lea.vmem [#allocation2], %s117
          %s119 = smul.u32 4, %s14
          %121 = vsyncadd %s115, 0
          %s122 = smul.addr %s119, 2
          %s123 = smul.addr %s122, 8
          %s124 = scalar_lea.hbm %s0, %s123
          %s125 = sshll.u32 %s124, 4
          %s126 = int_to_ptr.hbm [resolvable:$true] %s125
          %s127 = sshll.u32 %s118, 4
          %s128 = int_to_ptr.vmem [resolvable:$true] %s127
          %133 = dma.hbm_to_vmem [thread:$0]  %s126, 1024, %s128, %s115, 256, 256, 16
        $region20: #{tpu_custom_call.1} parent=15 // pred_fallthru
          _
        // Predicated region
        $region21: #{tpu_custom_call.1} parent=15 // pred_check
          %p134 = pneg %p60
        $region22: #{tpu_custom_call.1} parent=15 // pred_check_branch
          %136 = sbr.rel (%p134) target = $region24
        $region23: #{tpu_custom_call.1} parent=15 // pred_region
          %s137 = smul.u32 4, %s14
          %p138 = scmp.lt.s32.totalorder %s137, 7
          %s139 = scalar_select %p138, %s137, 7
          %s140 = smul.addr %s139, 8
          %s141 = scalar_lea.vmem %s1, %s140
          %s142 = smul.u32 4, %s14
        $region24: #{tpu_custom_call.1} parent=15 // pred_fallthru
          _
      $region16: #{tpu_custom_call.1} parent=5 // pred_fallthru
        _
      %p143 = scmp.le.s32.totalorder 1, %s14
      %p144 = scmp.lt.s32.totalorder %s14, 3
      %p145 = pnand %p143, %p144
      %p146 = pneg %p145
      // Predicated region
      $region25: #{tpu_custom_call.1} parent=5 // pred_check
        _
      $region26: #{tpu_custom_call.1} parent=5 // pred_check_branch
        %148 = sbr.rel (%p145) target = $region28
      $region27: #{tpu_custom_call.1} parent=5 // pred_region
        %s149 = ssub.s32 %s14, 1
        %s150 = sand.u32 %s27, 1
        %s151 = scalar_lea.sflag [#allocation3], %s150
        %s152 = sand.u32 %s27, 1
        %s153 = smul.addr %s152, 64
        %s154 = scalar_lea.vmem [#allocation2], %s153
        // Predicated region
        $region29: #{tpu_custom_call.1} parent=27 // pred_check
          %p155 = pneg %p40
        $region30: #{tpu_custom_call.1} parent=27 // pred_check_branch
          %157 = sbr.rel (%p155) target = $region32
        $region31: #{tpu_custom_call.1} parent=27 // pred_region
          %159 = dma.done %s151, 1024
        $region32: #{tpu_custom_call.1} parent=27 // pred_fallthru
          _
        %s160 = sand.u32 %s27, 1
        %s161 = scalar_lea.sflag [#allocation3], %s160
        %s162 = sand.u32 %s27, 1
        %s163 = smul.addr %s162, 64
        %s164 = scalar_lea.vmem [#allocation2], %s163
        %p165 = pneg %p40
        %p166 = pneg %p37
        %s167 = smul.u32 4, %s19
        %p168 = scmp.lt.s32.totalorder %s167, 7
        %s169 = scalar_select %p168, %s167, 7
        %s170 = smul.addr %s169, 8
        %s171 = scalar_lea.vmem %s1, %s170
        %p172 = pneg %p66
        %p173 = pneg %p63
        %p174 = pneg %p92
        %p175 = pneg %p89
        %s176 = sand.u32 %s79, 1
        %s177 = scalar_lea.sflag [#allocation4], %s176
        %s178 = sand.u32 %s79, 1
        %s179 = smul.addr %s178, 32
        %s180 = scalar_lea.vmem [#allocation5], %s179
        %s181 = smul.u32 4, %s19
        %s182 = smul.u32 4, %s19
        %p183 = scmp.lt.s32.totalorder %s182, 7
        %s184 = scalar_select %p183, %s182, 7
        %s185 = smul.addr %s184, 8
        %s186 = scalar_lea.vmem %s1, %s185
        %s187 = smul.u32 4, %s19
        %s188 = smul.u32 4, %s19
        %v189 = vld [vmem:[%s186] sm:$0xff]
        %v190 = vld [vmem:[%s186 + $0x8] sm:$0xff]
        %v191 = vld [vmem:[%s186 + $0x10] sm:$0xff]
        %v192 = vld [vmem:[%s186 + $0x18] sm:$0xff]
        %v193 = vld [vmem:[%s154] sm:$0xff]
        %v194 = vld [vmem:[%s154 + $0x10] sm:$0xff]
        %v195 = vld [vmem:[%s154 + $0x20] sm:$0xff]
        %v196 = vld [vmem:[%s154 + $0x30] sm:$0xff]
        %v197 = vld [vmem:[%s154 + $0x8] sm:$0xff]
        %v198 = vld [vmem:[%s154 + $0x18] sm:$0xff]
        %v199 = vld [vmem:[%s154 + $0x28] sm:$0xff]
        %v200 = vld [vmem:[%s154 + $0x38] sm:$0xff]
        %v201 = vsub.f32 %v193, %v197
        %v202 = vsub.f32 %v194, %v198
        %v203 = vsub.f32 %v195, %v199
        %v204 = vsub.f32 %v196, %v200
        %206 = vset.pattern.permute.xlu0 0
        %207 = vperm.xlu0 %206, %v189
        %v208 = vpop.permute.xlu0 %207
        %211 = vset.pattern.permute.xlu0 0
        %212 = vperm.xlu0 %211, %v190
        %v213 = vpop.permute.xlu0 %212
        %216 = vset.pattern.permute.xlu0 0
        %217 = vperm.xlu0 %216, %v191
        %v218 = vpop.permute.xlu0 %217
        %221 = vset.pattern.permute.xlu0 0
        %222 = vperm.xlu0 %221, %v192
        %v223 = vpop.permute.xlu0 %222
        %v225 = vmul.f32 %v208, %v201
        %v226 = vmul.f32 %v213, %v202
        %v227 = vmul.f32 %v218, %v203
        %v228 = vmul.f32 %v223, %v204
        %v229 = vadd.f32 %v197, %v225
        %v230 = vadd.f32 %v198, %v226
        %v231 = vadd.f32 %v199, %v227
        %v232 = vadd.f32 %v200, %v228
        %233 = vst [vmem:[%s180] sm:$0xff] %v229
        %234 = vst [vmem:[%s180 + $0x8] sm:$0xff] %v230
        %235 = vst [vmem:[%s180 + $0x10] sm:$0xff] %v231
        %236 = vst [vmem:[%s180 + $0x18] sm:$0xff] %v232
        %s237 = sand.u32 %s79, 1
        %s238 = scalar_lea.sflag [#allocation4], %s237
        %s239 = sand.u32 %s79, 1
        %s240 = smul.addr %s239, 32
        %s241 = scalar_lea.vmem [#allocation5], %s240
        // Predicated region
        $region33: #{tpu_custom_call.1} parent=27 // pred_check
          %p242 = pneg %p89
        $region34: #{tpu_custom_call.1} parent=27 // pred_check_branch
          %244 = sbr.rel (%p242) target = $region36
        $region35: #{tpu_custom_call.1} parent=27 // pred_region
          %s245 = smul.u32 4, %s19
          %247 = vsyncadd %s238, 0
          %s248 = smul.addr %s245, 8
          %s249 = scalar_lea.hbm %s2, %s248
          %s250 = sshll.u32 %s241, 4
          %s251 = int_to_ptr.vmem [resolvable:$true] %s250
          %s252 = sshll.u32 %s249, 4
          %s253 = int_to_ptr.hbm [resolvable:$true] %s252
          %258 = dma.vmem_to_hbm [thread:$0]  %s251, 512, %s253, %s238, 128, 128, 8
        $region36: #{tpu_custom_call.1} parent=27 // pred_fallthru
          _
      $region28: #{tpu_custom_call.1} parent=5 // pred_fallthru
        _
      %p259 = scmp.le.s32.totalorder 2, %s14
      // Predicated region
      $region37: #{tpu_custom_call.1} parent=5 // pred_check
        %p260 = pneg %p259
      $region38: #{tpu_custom_call.1} parent=5 // pred_check_branch
        %262 = sbr.rel (%p260) target = $region40
      $region39: #{tpu_custom_call.1} parent=5 // pred_region
        %s263 = ssub.s32 %s14, 2
        // Predicated region
        $region41: #{tpu_custom_call.1} parent=39 // pred_check
          %p264 = pneg %p95
        $region42: #{tpu_custom_call.1} parent=39 // pred_check_branch
          %266 = sbr.rel (%p264) target = $region44
        $region43: #{tpu_custom_call.1} parent=39 // pred_region
          %s267 = sand.u32 %s80, 1
          %s268 = scalar_lea.sflag [#allocation4], %s267
          %s269 = sand.u32 %s80, 1
          %s270 = smul.addr %s269, 32
          %s271 = scalar_lea.vmem [#allocation5], %s270
          %273 = dma.done %s268, 512
        $region44: #{tpu_custom_call.1} parent=39 // pred_fallthru
          _
      $region40: #{tpu_custom_call.1} parent=5 // pred_fallthru
        _
    $region6: #{tpu_custom_call.1} parent=1 // loop_footer
      %s18 = sadd.s32 1, %s14
    $region7: #{tpu_custom_call.1} parent=1 // loop_footer_branch
      %13 = sbr.rel target = $region3
    $region8: #{tpu_custom_call.1} parent=1 // loop_exit
      _
    %274 = vsyncpa [#allocation3], 1
    %s275 = scalar_lea.sflag [#allocation3], 1
    %276 = vsyncpa %s275, 1
    %277 = vsyncpa [#allocation4], 1
    %s278 = scalar_lea.sflag [#allocation4], 1
    %279 = vsyncpa %s278, 1

</llo_original>
